<compile_context>
chip_gen: v7x
topology: tpu7x:2x2x1
jax: 0.10.0
libtpu: 0.0.40
codegen_flags: <defaults>
</compile_context>

<pallas_src>
import functools

import jax
import jax.numpy as jnp
from jax.experimental import pallas as pl
from jax.experimental.pallas import tpu as pltpu


LEAKY_SLOPE = 0.01   # torch.nn.LeakyReLU default negative_slope
LANE = 128
MAX_TILE_B = 1024    # rows-per-grid-step cap (well under VMEM even on v7x)


def _round_up(x, m):
    return ((x + m - 1) // m) * m


def _mlp_kernel(n_hidden, *refs):
    """refs = (x_ref, w1, b1, ..., w_nh, b_nh, w_last_col, b_last, out_ref).

    Batch-on-lane layout:
      x_ref        : [state_dim, TILE_B]
      hidden w, b  : [out, in], [out, 1]   (PyTorch-native weight layout)
      w_last_col   : [hidden_last, 1]      (last layer weight, pre-transposed)
      b_last       : [1, 1]
      out_ref      : [1, TILE_B]
    """
    x_ref = refs[0]
    out_ref = refs[-1]
    params = refs[1:-1]

    h = x_ref[...].astype(jnp.float32)                      # [state_dim, TILE_B]
    for li in range(n_hidden):
        w = params[2 * li][...]                             # [out, in]
        b = params[2 * li + 1][...]                         # [out, 1]
        h = jnp.dot(w, h, preferred_element_type=jnp.float32) + b
        h = jnp.where(h > 0, h, LEAKY_SLOPE * h)            # LeakyReLU(0.01)

    # Final 1-wide output: VPU multiply + sublane reduce (no N=1 MXU matmul).
    w_last = params[2 * n_hidden][...]                      # [hidden_last, 1]
    b_last = params[2 * n_hidden + 1][...]                  # [1, 1]
    val = jnp.sum(w_last * h, axis=0, keepdims=True) + b_last   # [1, TILE_B]
    out_ref[...] = val.astype(out_ref.dtype)


def init_value_network_params(key, state_dim, net_dims, dtype=jnp.float32):
    """PyTorch-convention parameters: list of (W [out, in], b [out])."""
    params = []
    last_dim = state_dim
    for out_dim in list(net_dims) + [1]:
        key, kw, kb = jax.random.split(key, 3)
        w = 0.1 * jax.random.normal(kw, (out_dim, last_dim), dtype=dtype)
        b = 0.1 * jax.random.normal(kb, (out_dim,), dtype=dtype)
        params.append((w, b))
        last_dim = out_dim
    return params


def value_network_forward(states, params, *, max_tile_b=MAX_TILE_B):
    """Full MLP forward in a single Pallas kernel.

    states: [B, state_dim] float32
    params: list of (W [out, in], b [out]); last pair has out == 1.
    returns: [B, 1] float32
    """
    B, state_dim = states.shape
    n_hidden = len(params) - 1

    # Lane-dense batch tile: as large as possible (<= max_tile_b) while keeping
    # the zero-padded tail small.
    n_tiles = pl.cdiv(B, max_tile_b)
    tile_b = _round_up(pl.cdiv(B, n_tiles), LANE)
    b_pad = n_tiles * tile_b
    grid = (n_tiles,)

    # Batch-on-lane activation layout: [state_dim, B_pad].
    x_t = states.T
    if b_pad != B:
        x_t = jnp.pad(x_t, ((0, 0), (0, b_pad - B)))

    # Flatten params into kernel layout; weights/biases are VMEM-resident
    # (full-extent blocks, constant index maps -> fetched once, never re-DMA'd).
    flat_params = []
    in_specs = [pl.BlockSpec((state_dim, tile_b), lambda i: (0, i))]
    for li, (w, b) in enumerate(params):
        if li < n_hidden:
            w_k = w                        # [out, in]
            b_k = b.reshape(-1, 1)         # [out, 1]
        else:
            w_k = w.T                      # [hidden_last, 1]
            b_k = b.reshape(1, 1)          # [1, 1]
        flat_params += [w_k, b_k]
        in_specs += [
            pl.BlockSpec(w_k.shape, lambda i: (0, 0)),
            pl.BlockSpec(b_k.shape, lambda i: (0, 0)),
        ]

    # Advisory cost estimate so XLA can schedule/overlap this small call.
    dims = [state_dim] + [w.shape[0] for w, _ in params]
    flops = 2 * B * sum(dims[i] * dims[i + 1] for i in range(len(dims) - 1))
    param_bytes = sum(
        w.size * w.dtype.itemsize + b.size * b.dtype.itemsize for w, b in params
    )
    bytes_accessed = B * state_dim * states.dtype.itemsize + B * 4 + param_bytes
    cost = pl.CostEstimate(
        flops=int(flops), transcendentals=0, bytes_accessed=int(bytes_accessed)
    )

    kernel = functools.partial(_mlp_kernel, n_hidden)

    out = pl.pallas_call(
        kernel,
        out_shape=jax.ShapeDtypeStruct((1, b_pad), jnp.float32),
        grid_spec=pltpu.PrefetchScalarGridSpec(
            num_scalar_prefetch=0,
            grid=grid,
            in_specs=in_specs,
            out_specs=pl.BlockSpec((1, tile_b), lambda i: (0, i)),
        ),
        compiler_params=pltpu.CompilerParams(
            dimension_semantics=("parallel",),
        ),
        cost_estimate=cost,
    )(x_t, *flat_params)

    return out[:, :B].T  # [B, 1]


def _reference_forward(states, params):
    """Pure-JAX reference with the same (PyTorch) parameter convention."""
    h = states
    n_hidden = len(params) - 1
    for li, (w, b) in enumerate(params):
        h = h @ w.T + b
        if li < n_hidden:
            h = jnp.where(h > 0, h, LEAKY_SLOPE * h)
    return h


if __name__ == "__main__":
    key = jax.random.PRNGKey(0)
    k_params, k_states = jax.random.split(key)

    batch = 2
    state_dim = 8
    net_dims = [32, 32]

    params = init_value_network_params(k_params, state_dim, net_dims)
    states = jax.random.normal(k_states, (batch, state_dim), dtype=jnp.float32)

    val = value_network_forward(states, params)
    val = jax.block_until_ready(val)

    ref = _reference_forward(states, params)
    assert val.shape == (batch, 1), f"bad output shape {val.shape}"
    assert jnp.allclose(val, ref, atol=1e-5, rtol=1e-5), "mismatch vs reference"

    print("KERNEL_OK")
</pallas_src>

<mosaic_0001>
module attributes {stable_mosaic.version = 11 : i64} {
  func.func @_mlp_kernel(%arg0: i32, %arg1: memref<8x128xf32, #tpu.memory_space<vmem>>, %arg2: memref<32x8xf32, #tpu.memory_space<vmem>>, %arg3: memref<32x1xf32, #tpu.memory_space<vmem>>, %arg4: memref<32x32xf32, #tpu.memory_space<vmem>>, %arg5: memref<32x1xf32, #tpu.memory_space<vmem>>, %arg6: memref<32x1xf32, #tpu.memory_space<vmem>>, %arg7: memref<1x1xf32, #tpu.memory_space<vmem>>, %arg8: memref<1x128xf32, #tpu.memory_space<vmem>>) attributes {dimension_semantics = [#tpu.dimension_semantics<parallel>], iteration_bounds = array<i64: 1>, scalar_prefetch = 0 : i64, scratch_operands = 0 : i64, tpu.core_type = #tpu.core_type<tc>, window_params = [{transform_indices = @transform_0, window_bounds = array<i64: 8, 128>}, {pipeline_mode = #tpu.pipeline_mode<synchronous>, transform_indices = @transform_1, window_bounds = array<i64: 32, 8>}, {pipeline_mode = #tpu.pipeline_mode<synchronous>, transform_indices = @transform_2, window_bounds = array<i64: 32, 1>}, {pipeline_mode = #tpu.pipeline_mode<synchronous>, transform_indices = @transform_3, window_bounds = array<i64: 32, 32>}, {pipeline_mode = #tpu.pipeline_mode<synchronous>, transform_indices = @transform_4, window_bounds = array<i64: 32, 1>}, {pipeline_mode = #tpu.pipeline_mode<synchronous>, transform_indices = @transform_5, window_bounds = array<i64: 32, 1>}, {pipeline_mode = #tpu.pipeline_mode<synchronous>, transform_indices = @transform_6, window_bounds = array<i64: 1, 1>}, {transform_indices = @transform_7, window_bounds = array<i64: 1, 128>}]} {
    %c0 = arith.constant 0 : index
    %c0_0 = arith.constant 0 : index
    %0 = vector.load %arg1[%c0, %c0_0] : memref<8x128xf32, #tpu.memory_space<vmem>>, vector<8x128xf32>
    %c0_1 = arith.constant 0 : index
    %c0_2 = arith.constant 0 : index
    %1 = vector.load %arg2[%c0_1, %c0_2] : memref<32x8xf32, #tpu.memory_space<vmem>>, vector<32x8xf32>
    %c0_3 = arith.constant 0 : index
    %c0_4 = arith.constant 0 : index
    %2 = vector.load %arg3[%c0_3, %c0_4] : memref<32x1xf32, #tpu.memory_space<vmem>>, vector<32x1xf32>
    %cst = arith.constant dense<0.000000e+00> : vector<32x128xf32>
    %3 = tpu.matmul %1, %0, %cst {dimension_numbers = #tpu.dot_dimension_numbers<[1], [0], [0], [1], [0, 0, 1, 1], [], []>} : vector<32x8xf32>, vector<8x128xf32>, vector<32x128xf32> -> vector<32x128xf32>
    %4 = vector.broadcast %2 : vector<32x1xf32> to vector<32x128xf32>
    %5 = arith.addf %3, %4 : vector<32x128xf32>
    %cst_5 = arith.constant 0.000000e+00 : f32
    %6 = vector.broadcast %cst_5 : f32 to vector<32x128xf32>
    %7 = arith.cmpf ogt, %5, %6 : vector<32x128xf32>
    %cst_6 = arith.constant 0.00999999977 : f32
    %8 = vector.broadcast %cst_6 : f32 to vector<32x128xf32>
    %9 = arith.mulf %8, %5 : vector<32x128xf32>
    %10 = arith.select %7, %5, %9 : vector<32x128xi1>, vector<32x128xf32>
    %c0_7 = arith.constant 0 : index
    %c0_8 = arith.constant 0 : index
    %11 = vector.load %arg4[%c0_7, %c0_8] : memref<32x32xf32, #tpu.memory_space<vmem>>, vector<32x32xf32>
    %c0_9 = arith.constant 0 : index
    %c0_10 = arith.constant 0 : index
    %12 = vector.load %arg5[%c0_9, %c0_10] : memref<32x1xf32, #tpu.memory_space<vmem>>, vector<32x1xf32>
    %cst_11 = arith.constant dense<0.000000e+00> : vector<32x128xf32>
    %13 = tpu.matmul %11, %10, %cst_11 {dimension_numbers = #tpu.dot_dimension_numbers<[1], [0], [0], [1], [0, 0, 1, 1], [], []>} : vector<32x32xf32>, vector<32x128xf32>, vector<32x128xf32> -> vector<32x128xf32>
    %14 = vector.broadcast %12 : vector<32x1xf32> to vector<32x128xf32>
    %15 = arith.addf %13, %14 : vector<32x128xf32>
    %cst_12 = arith.constant 0.000000e+00 : f32
    %16 = vector.broadcast %cst_12 : f32 to vector<32x128xf32>
    %17 = arith.cmpf ogt, %15, %16 : vector<32x128xf32>
    %cst_13 = arith.constant 0.00999999977 : f32
    %18 = vector.broadcast %cst_13 : f32 to vector<32x128xf32>
    %19 = arith.mulf %18, %15 : vector<32x128xf32>
    %20 = arith.select %17, %15, %19 : vector<32x128xi1>, vector<32x128xf32>
    %c0_14 = arith.constant 0 : index
    %c0_15 = arith.constant 0 : index
    %21 = vector.load %arg6[%c0_14, %c0_15] : memref<32x1xf32, #tpu.memory_space<vmem>>, vector<32x1xf32>
    %c0_16 = arith.constant 0 : index
    %c0_17 = arith.constant 0 : index
    %22 = vector.load %arg7[%c0_16, %c0_17] : memref<1x1xf32, #tpu.memory_space<vmem>>, vector<1x1xf32>
    %23 = vector.broadcast %21 : vector<32x1xf32> to vector<32x128xf32>
    %24 = arith.mulf %23, %20 : vector<32x128xf32>
    %cst_18 = arith.constant dense<0.000000e+00> : vector<128xf32>
    %25 = vector.multi_reduction <add>, %24, %cst_18 [0] : vector<32x128xf32> to vector<128xf32>
    %26 = vector.shape_cast %25 : vector<128xf32> to vector<1x128xf32>
    %27 = vector.broadcast %22 : vector<1x1xf32> to vector<1x128xf32>
    %28 = arith.addf %26, %27 : vector<1x128xf32>
    %c0_19 = arith.constant 0 : index
    %c0_20 = arith.constant 0 : index
    %29 = vector.load %arg8[%c0_19, %c0_20] : memref<1x128xf32, #tpu.memory_space<vmem>>, vector<1x128xf32>
    tpu.vector_store %arg8[%c0_19, %c0_20], %28 {strides = array<i32>} : memref<1x128xf32, #tpu.memory_space<vmem>>, vector<1x128xf32>,
    return
  }
  func.func @transform_0(%arg0: i32) -> (i32, i32) {
    %c0_i32 = arith.constant 0 : i32
    %c0_i32_0 = arith.constant 0 : i32
    return %c0_i32, %arg0 : i32, i32
  }
  func.func @transform_1(%arg0: i32) -> (i32, i32) {
    %c0_i32 = arith.constant 0 : i32
    %c0_i32_0 = arith.constant 0 : i32
    %c0_i32_1 = arith.constant 0 : i32
    return %c0_i32, %c0_i32_0 : i32, i32
  }
  func.func @transform_2(%arg0: i32) -> (i32, i32) {
    %c0_i32 = arith.constant 0 : i32
    %c0_i32_0 = arith.constant 0 : i32
    %c0_i32_1 = arith.constant 0 : i32
    return %c0_i32, %c0_i32_0 : i32, i32
  }
  func.func @transform_3(%arg0: i32) -> (i32, i32) {
    %c0_i32 = arith.constant 0 : i32
    %c0_i32_0 = arith.constant 0 : i32
    %c0_i32_1 = arith.constant 0 : i32
    return %c0_i32, %c0_i32_0 : i32, i32
  }
  func.func @transform_4(%arg0: i32) -> (i32, i32) {
    %c0_i32 = arith.constant 0 : i32
    %c0_i32_0 = arith.constant 0 : i32
    %c0_i32_1 = arith.constant 0 : i32
    return %c0_i32, %c0_i32_0 : i32, i32
  }
  func.func @transform_5(%arg0: i32) -> (i32, i32) {
    %c0_i32 = arith.constant 0 : i32
    %c0_i32_0 = arith.constant 0 : i32
    %c0_i32_1 = arith.constant 0 : i32
    return %c0_i32, %c0_i32_0 : i32, i32
  }
  func.func @transform_6(%arg0: i32) -> (i32, i32) {
    %c0_i32 = arith.constant 0 : i32
    %c0_i32_0 = arith.constant 0 : i32
    %c0_i32_1 = arith.constant 0 : i32
    return %c0_i32, %c0_i32_0 : i32, i32
  }
  func.func @transform_7(%arg0: i32) -> (i32, i32) {
    %c0_i32 = arith.constant 0 : i32
    %c0_i32_0 = arith.constant 0 : i32
    return %c0_i32, %arg0 : i32, i32
  }
}

</mosaic_0001>

<llo_original>
// kernel: tpu_custom_call.1
$region0: #{tpu_custom_call.1}
  #allocation0 [shape = 'u32[]', space=smem, size = 0x4, offset = 0x4, fixed_abs, tag = 'smem constant byte address 0x4 - core index']
  #allocation1 [shape = 'u32[144,128]{1,0:T(1,128)}', space=vmem, size = 0x12000, scoped, tag = 'internal scratch']
  #allocation2 [shape = 'f32[1,1]{1,0:T(1,128)S(1)}', space=vmem, size = 0x200, scoped, tag = 'scoped memory for tpu_custom_call.1']
  %s0 = inlined_call_operand.vmem [shape: f32[8,128], index: 0, kind: input, shape index: {}]
  %s1 = inlined_call_operand.vmem [shape: f32[32,8], index: 1, kind: input, shape index: {}]
  %s2 = inlined_call_operand.vmem [shape: f32[32,1], index: 2, kind: input, shape index: {}]
  %s3 = inlined_call_operand.vmem [shape: f32[32,32], index: 3, kind: input, shape index: {}]
  %s4 = inlined_call_operand.vmem [shape: f32[32,1], index: 4, kind: input, shape index: {}]
  %s5 = inlined_call_operand.vmem [shape: f32[32,1], index: 5, kind: input, shape index: {}]
  %s6 = inlined_call_operand.<no memory space> [shape: f32[1,1], index: 6, kind: input, shape index: {}]
  %s7 = inlined_call_operand.hbm [shape: f32[1,128], index: 7, kind: output, shape index: {}]
  %s8 = sld [smem:[#allocation0]]
  $region38: #{tpu_custom_call.1} parent=0
    _
  %s10 = ssub.s32 1, %s8
  %s11 = scalar_select 0, %s10, %s8
  %v12 = vstv %s6
  %13 = vst [vmem:[#allocation2] sm:$0x1] %v12
  $region1: #{tpu_custom_call.1} parent=0
    #allocation3 [shape = 'u8[512]{0}', space=vmem, size = 0x400, scoped, tag = 'output window, operand 0, single buffered']
    #allocation4 [shape = 's32[1]{0}', space=sflag, size = 0x4, scoped, tag = 'scoped memory for tpu_custom_call.1']
    %14 = vsyncpa [#allocation4], 0
    // Predicated region
    $region2: #{tpu_custom_call.1} parent=1 // pred_check
      _
    $region3: #{tpu_custom_call.1} parent=1 // pred_check_branch
      %16 = sbr.rel (0) target = $region5
    $region4: #{tpu_custom_call.1} parent=1 // pred_region
      _
    $region5: #{tpu_custom_call.1} parent=1 // pred_fallthru
      _
    // Predicated region
    $region6: #{tpu_custom_call.1} parent=1 // pred_check
      _
    $region7: #{tpu_custom_call.1} parent=1 // pred_check_branch
      %18 = sbr.rel (0) target = $region9
    $region8: #{tpu_custom_call.1} parent=1 // pred_region
      _
    $region9: #{tpu_custom_call.1} parent=1 // pred_fallthru
      _
    // Predicated region
    $region10: #{tpu_custom_call.1} parent=1 // pred_check
      _
    $region11: #{tpu_custom_call.1} parent=1 // pred_check_branch
      %20 = sbr.rel (0) target = $region13
    $region12: #{tpu_custom_call.1} parent=1 // pred_region
      _
    $region13: #{tpu_custom_call.1} parent=1 // pred_fallthru
      _
    // Predicated region
    $region14: #{tpu_custom_call.1} parent=1 // pred_check
      _
    $region15: #{tpu_custom_call.1} parent=1 // pred_check_branch
      %22 = sbr.rel (0) target = $region17
    $region16: #{tpu_custom_call.1} parent=1 // pred_region
      _
    $region17: #{tpu_custom_call.1} parent=1 // pred_fallthru
      _
    // Predicated region
    $region18: #{tpu_custom_call.1} parent=1 // pred_check
      _
    $region19: #{tpu_custom_call.1} parent=1 // pred_check_branch
      %24 = sbr.rel (0) target = $region21
    $region20: #{tpu_custom_call.1} parent=1 // pred_region
      _
    $region21: #{tpu_custom_call.1} parent=1 // pred_fallthru
      _
    // Predicated region
    $region22: #{tpu_custom_call.1} parent=1 // pred_check
      _
    $region23: #{tpu_custom_call.1} parent=1 // pred_check_branch
      %26 = sbr.rel (0) target = $region25
    $region24: #{tpu_custom_call.1} parent=1 // pred_region
      _
    $region25: #{tpu_custom_call.1} parent=1 // pred_fallthru
      _
    // Predicated region
    $region26: #{tpu_custom_call.1} parent=1 // pred_check
      _
    $region27: #{tpu_custom_call.1} parent=1 // pred_check_branch
      %28 = sbr.rel (0) target = $region29
    $region28: #{tpu_custom_call.1} parent=1 // pred_region
      _
    $region29: #{tpu_custom_call.1} parent=1 // pred_fallthru
      _
    %v29 = vld [vmem:[%s0] sm:$0xff]
    %v30 = vld [vmem:[%s1] sm:$0xff]
    %v31 = vld [vmem:[%s1 + $0x8] sm:$0xff]
    %v32 = vld [vmem:[%s1 + $0x10] sm:$0xff]
    %v33 = vld [vmem:[%s1 + $0x18] sm:$0xff]
    %v34 = vld [vmem:[%s2] sm:$0xff]
    %v35 = vld [vmem:[%s2 + $0x8] sm:$0xff]
    %v36 = vld [vmem:[%s2 + $0x10] sm:$0xff]
    %v37 = vld [vmem:[%s2 + $0x18] sm:$0xff]
    %39 = vset.pattern.permute.xlu0 0
    %40 = vperm.xlu0 %39, %v34
    %v41 = vpop.permute.xlu0 %40
    %44 = vset.pattern.permute.xlu0 0
    %45 = vperm.xlu0 %44, %v35
    %v46 = vpop.permute.xlu0 %45
    %49 = vset.pattern.permute.xlu0 0
    %50 = vperm.xlu0 %49, %v36
    %v51 = vpop.permute.xlu0 %50
    %54 = vset.pattern.permute.xlu0 0
    %55 = vperm.xlu0 %54, %v37
    %v56 = vpop.permute.xlu0 %55
    %vm58 = vcmask 64512
    %v60 = vsel %vm58, %v30, 0
    %v63 = vsel %vm58, %v31, 0
    %v66 = vsel %vm58, %v32, 0
    %v69 = vsel %vm58, %v33, 0
    %71 = vmatprep.subr.mxu0 0.0
    %72 = vmatpush1.msra.mxu0 %v29
    %73 = vmatprep.subr.mxu0 0.0
    %74 = vmatpush1.msra.mxu0 0.0
    %75 = vmatprep.subr.mxu0 0.0
    %76 = vmatpush1.msra.mxu0 0.0
    %77 = vmatprep.subr.mxu0 0.0
    %78 = vmatpush1.msra.mxu0 0.0
    %79 = vmatprep.subr.mxu0 0.0
    %80 = vmatpush1.msra.mxu0 0.0
    %81 = vmatprep.subr.mxu0 0.0
    %82 = vmatpush1.msra.mxu0 0.0
    %83 = vmatprep.subr.mxu0 0.0
    %84 = vmatpush1.msra.mxu0 0.0
    %85 = vmatprep.subr.mxu0 0.0
    %86 = vmatpush1.msra.mxu0 0.0
    %87 = vmatprep.subr.mxu0 0.0
    %88 = vmatpush1.msra.mxu0 0.0
    %89 = vmatprep.subr.mxu0 0.0
    %90 = vmatpush1.msra.mxu0 0.0
    %91 = vmatprep.subr.mxu0 0.0
    %92 = vmatpush1.msra.mxu0 0.0
    %93 = vmatprep.subr.mxu0 0.0
    %94 = vmatpush1.msra.mxu0 0.0
    %95 = vmatprep.subr.mxu0 0.0
    %96 = vmatpush1.msra.mxu0 0.0
    %97 = vmatprep.subr.mxu0 0.0
    %98 = vmatpush1.msra.mxu0 0.0
    %99 = vmatprep.subr.mxu0 0.0
    %100 = vmatpush1.msra.mxu0 0.0
    %101 = vmatprep.subr.mxu0 0.0
    %102 = vmatpush1.msra.mxu0 0.0
    %103 = vmatprep.subr.mxu0 0.0
    %104 = vmatpush1.msra.mxu0 0.0
    %105 = vmatprep.subr.mxu0 0.0
    %106 = vmatpush1.msra.mxu0 0.0
    %107 = vmatprep.subr.mxu0 0.0
    %108 = vmatpush1.msra.mxu0 0.0
    %109 = vmatprep.subr.mxu0 0.0
    %110 = vmatpush1.msra.mxu0 0.0
    %111 = vmatprep.subr.mxu0 0.0
    %112 = vmatpush1.msra.mxu0 0.0
    %113 = vmatprep.subr.mxu0 0.0
    %114 = vmatpush1.msra.mxu0 0.0
    %115 = vmatprep.subr.mxu0 0.0
    %116 = vmatpush1.msra.mxu0 0.0
    %117 = vmatprep.subr.mxu0 0.0
    %118 = vmatpush1.msra.mxu0 0.0
    %119 = vmatprep.subr.mxu0 0.0
    %120 = vmatpush1.msra.mxu0 0.0
    %121 = vmatprep.subr.mxu0 0.0
    %122 = vmatpush1.msra.mxu0 0.0
    %123 = vmatprep.subr.mxu0 0.0
    %124 = vmatpush1.msra.mxu0 0.0
    %125 = vmatprep.subr.mxu0 0.0
    %126 = vmatpush1.msra.mxu0 0.0
    %127 = vmatprep.subr.mxu0 0.0
    %128 = vmatpush1.msra.mxu0 0.0
    %129 = vmatprep.subr.mxu0 0.0
    %130 = vmatpush1.msra.mxu0 0.0
    %131 = vmatprep.subr.mxu0 0.0
    %132 = vmatpush1.msra.mxu0 0.0
    %133 = vmatprep.subr.mxu0 0.0
    %134 = vmatpush1.msra.mxu0 0.0
    %135 = vmatprep.mubr.f32.mxu0 0.0
    %136 = vmatmul.mubr.f32.gmra.mrb[0].mxu0 %v60
    %v137 = vpop.f32.mrb[0].mxu0
    %v138 = vadd.f32 %v41, %v137
    %v139 = vpop.f32.mrb[0].mxu0
    %140 = vmatprep.mubr.f32.mxu0 0.0
    %141 = vmatmul.mubr.f32.gmra.mrb[0].mxu0 %v63
    %v142 = vpop.f32.mrb[0].mxu0
    %v143 = vadd.f32 %v46, %v142
    %v144 = vpop.f32.mrb[0].mxu0
    %145 = vmatprep.mubr.f32.mxu0 0.0
    %146 = vmatmul.mubr.f32.gmra.mrb[0].mxu0 %v66
    %v147 = vpop.f32.mrb[0].mxu0
    %v148 = vadd.f32 %v51, %v147
    %v149 = vpop.f32.mrb[0].mxu0
    %150 = vmatprep.mubr.f32.mxu0 0.0
    %151 = vmatmul.mubr.f32.gmra.mrb[0].mxu0 %v69
    %v152 = vpop.f32.mrb[0].mxu0
    %v153 = vadd.f32 %v56, %v152
    %v154 = vpop.f32.mrb[0].mxu0
    %155 = vdwg.mxu0
    %vm156 = vcmp.gt.f32.partialorder %v138, 0.0
    %vm157 = vcmp.gt.f32.partialorder %v143, 0.0
    %vm158 = vcmp.gt.f32.partialorder %v148, 0.0
    %vm159 = vcmp.gt.f32.partialorder %v153, 0.0
    %v160 = vmul.f32 %v138, 0.01
    %v161 = vmul.f32 %v143, 0.01
    %v162 = vmul.f32 %v148, 0.01
    %v163 = vmul.f32 %v153, 0.01
    %v164 = vsel %vm156, %v138, %v160
    %v165 = vsel %vm157, %v143, %v161
    %v166 = vsel %vm158, %v148, %v162
    %v167 = vsel %vm159, %v153, %v163
    %v168 = vld [vmem:[%s3] sm:$0xff]
    %v169 = vld [vmem:[%s3 + $0x8] sm:$0xff]
    %v170 = vld [vmem:[%s3 + $0x10] sm:$0xff]
    %v171 = vld [vmem:[%s3 + $0x18] sm:$0xff]
    %v172 = vld [vmem:[%s4] sm:$0xff]
    %v173 = vld [vmem:[%s4 + $0x8] sm:$0xff]
    %v174 = vld [vmem:[%s4 + $0x10] sm:$0xff]
    %v175 = vld [vmem:[%s4 + $0x18] sm:$0xff]
    %177 = vset.pattern.permute.xlu0 0
    %178 = vperm.xlu0 %177, %v172
    %v179 = vpop.permute.xlu0 %178
    %182 = vset.pattern.permute.xlu0 0
    %183 = vperm.xlu0 %182, %v173
    %v184 = vpop.permute.xlu0 %183
    %187 = vset.pattern.permute.xlu0 0
    %188 = vperm.xlu0 %187, %v174
    %v189 = vpop.permute.xlu0 %188
    %192 = vset.pattern.permute.xlu0 0
    %193 = vperm.xlu0 %192, %v175
    %v194 = vpop.permute.xlu0 %193
    %vm196 = vcmask 261120
    %v198 = vsel %vm196, %v168, 0
    %v201 = vsel %vm196, %v169, 0
    %v204 = vsel %vm196, %v170, 0
    %v207 = vsel %vm196, %v171, 0
    %209 = vmatprep.subr.mxu0 0.0
    %210 = vmatpush1.msra.mxu0 %v164
    %211 = vmatprep.subr.mxu0 0.0
    %212 = vmatpush1.msra.mxu0 %v165
    %213 = vmatprep.subr.mxu0 0.0
    %214 = vmatpush1.msra.mxu0 %v166
    %215 = vmatprep.subr.mxu0 0.0
    %216 = vmatpush1.msra.mxu0 %v167
    %217 = vmatprep.subr.mxu0 0.0
    %218 = vmatpush1.msra.mxu0 0.0
    %219 = vmatprep.subr.mxu0 0.0
    %220 = vmatpush1.msra.mxu0 0.0
    %221 = vmatprep.subr.mxu0 0.0
    %222 = vmatpush1.msra.mxu0 0.0
    %223 = vmatprep.subr.mxu0 0.0
    %224 = vmatpush1.msra.mxu0 0.0
    %225 = vmatprep.subr.mxu0 0.0
    %226 = vmatpush1.msra.mxu0 0.0
    %227 = vmatprep.subr.mxu0 0.0
    %228 = vmatpush1.msra.mxu0 0.0
    %229 = vmatprep.subr.mxu0 0.0
    %230 = vmatpush1.msra.mxu0 0.0
    %231 = vmatprep.subr.mxu0 0.0
    %232 = vmatpush1.msra.mxu0 0.0
    %233 = vmatprep.subr.mxu0 0.0
    %234 = vmatpush1.msra.mxu0 0.0
    %235 = vmatprep.subr.mxu0 0.0
    %236 = vmatpush1.msra.mxu0 0.0
    %237 = vmatprep.subr.mxu0 0.0
    %238 = vmatpush1.msra.mxu0 0.0
    %239 = vmatprep.subr.mxu0 0.0
    %240 = vmatpush1.msra.mxu0 0.0
    %241 = vmatprep.subr.mxu0 0.0
    %242 = vmatpush1.msra.mxu0 0.0
    %243 = vmatprep.subr.mxu0 0.0
    %244 = vmatpush1.msra.mxu0 0.0
    %245 = vmatprep.subr.mxu0 0.0
    %246 = vmatpush1.msra.mxu0 0.0
    %247 = vmatprep.subr.mxu0 0.0
    %248 = vmatpush1.msra.mxu0 0.0
    %249 = vmatprep.subr.mxu0 0.0
    %250 = vmatpush1.msra.mxu0 0.0
    %251 = vmatprep.subr.mxu0 0.0
    %252 = vmatpush1.msra.mxu0 0.0
    %253 = vmatprep.subr.mxu0 0.0
    %254 = vmatpush1.msra.mxu0 0.0
    %255 = vmatprep.subr.mxu0 0.0
    %256 = vmatpush1.msra.mxu0 0.0
    %257 = vmatprep.subr.mxu0 0.0
    %258 = vmatpush1.msra.mxu0 0.0
    %259 = vmatprep.subr.mxu0 0.0
    %260 = vmatpush1.msra.mxu0 0.0
    %261 = vmatprep.subr.mxu0 0.0
    %262 = vmatpush1.msra.mxu0 0.0
    %263 = vmatprep.subr.mxu0 0.0
    %264 = vmatpush1.msra.mxu0 0.0
    %265 = vmatprep.subr.mxu0 0.0
    %266 = vmatpush1.msra.mxu0 0.0
    %267 = vmatprep.subr.mxu0 0.0
    %268 = vmatpush1.msra.mxu0 0.0
    %269 = vmatprep.subr.mxu0 0.0
    %270 = vmatpush1.msra.mxu0 0.0
    %271 = vmatprep.subr.mxu0 0.0
    %272 = vmatpush1.msra.mxu0 0.0
    %273 = vmatprep.mubr.f32.mxu0 0.0
    %274 = vmatmul.mubr.f32.gmra.mrb[0].mxu0 %v198
    %v275 = vpop.f32.mrb[0].mxu0
    %v276 = vadd.f32 %v179, %v275
    %v277 = vpop.f32.mrb[0].mxu0
    %278 = vmatprep.mubr.f32.mxu0 0.0
    %279 = vmatmul.mubr.f32.gmra.mrb[0].mxu0 %v201
    %v280 = vpop.f32.mrb[0].mxu0
    %v281 = vadd.f32 %v184, %v280
    %v282 = vpop.f32.mrb[0].mxu0
    %283 = vmatprep.mubr.f32.mxu0 0.0
    %284 = vmatmul.mubr.f32.gmra.mrb[0].mxu0 %v204
    %v285 = vpop.f32.mrb[0].mxu0
    %v286 = vadd.f32 %v189, %v285
    %v287 = vpop.f32.mrb[0].mxu0
    %288 = vmatprep.mubr.f32.mxu0 0.0
    %289 = vmatmul.mubr.f32.gmra.mrb[0].mxu0 %v207
    %v290 = vpop.f32.mrb[0].mxu0
    %v291 = vadd.f32 %v194, %v290
    %v292 = vpop.f32.mrb[0].mxu0
    %293 = vdwg.mxu0
    %vm294 = vcmp.gt.f32.partialorder %v276, 0.0
    %vm295 = vcmp.gt.f32.partialorder %v281, 0.0
    %vm296 = vcmp.gt.f32.partialorder %v286, 0.0
    %vm297 = vcmp.gt.f32.partialorder %v291, 0.0
    %v298 = vmul.f32 %v276, 0.01
    %v299 = vmul.f32 %v281, 0.01
    %v300 = vmul.f32 %v286, 0.01
    %v301 = vmul.f32 %v291, 0.01
    %v302 = vsel %vm294, %v276, %v298
    %v303 = vsel %vm295, %v281, %v299
    %v304 = vsel %vm296, %v286, %v300
    %v305 = vsel %vm297, %v291, %v301
    %v306 = vld [vmem:[%s5] sm:$0xff]
    %v307 = vld [vmem:[%s5 + $0x8] sm:$0xff]
    %v308 = vld [vmem:[%s5 + $0x10] sm:$0xff]
    %v309 = vld [vmem:[%s5 + $0x18] sm:$0xff]
    %v310 = vld [vmem:[#allocation2] sm:$0x1]
    %312 = vset.pattern.permute.xlu0 0
    %313 = vperm.xlu0 %312, %v306
    %v314 = vpop.permute.xlu0 %313
    %317 = vset.pattern.permute.xlu0 0
    %318 = vperm.xlu0 %317, %v307
    %v319 = vpop.permute.xlu0 %318
    %322 = vset.pattern.permute.xlu0 0
    %323 = vperm.xlu0 %322, %v308
    %v324 = vpop.permute.xlu0 %323
    %327 = vset.pattern.permute.xlu0 0
    %328 = vperm.xlu0 %327, %v309
    %v329 = vpop.permute.xlu0 %328
    %v331 = vmul.f32 %v314, %v302
    %v332 = vmul.f32 %v319, %v303
    %v333 = vmul.f32 %v324, %v304
    %v334 = vmul.f32 %v329, %v305
    %v335 = vadd.f32 %v331, %v332
    %v336 = vadd.f32 %v335, %v333
    %v337 = vadd.f32 %v336, %v334
    %v338 = vrot.slane %v337, 4
    %v339 = vadd.f32 %v337, %v338
    %v340 = vrot.slane %v339, 2
    %v341 = vadd.f32 %v339, %v340
    %v342 = vrot.slane %v341, 1
    %v343 = vadd.f32 %v341, %v342
    %345 = vset.pattern.permute.xlu0 0
    %346 = vperm.xlu0 %345, %v310
    %v347 = vpop.permute.xlu0 %346
    %v349 = vlaneseq
    %v350 = vshrl.u32 %v349, 7
    %v351 = vsub.s32 0, %v350
    %v352 = vrot.slane %v347, %v351
    %v353 = vadd.f32 %v343, %v352
    %354 = vst [vmem:[#allocation3] sm:$0x1] %v353
    // Predicated region
    $region30: #{tpu_custom_call.1} parent=1 // pred_check
      _
    $region31: #{tpu_custom_call.1} parent=1 // pred_check_branch
      %356 = sbr.rel (0) target = $region33
    $region32: #{tpu_custom_call.1} parent=1 // pred_region
      %s358 = ssub.s32 16, 16
      %359 = vsyncadd [#allocation4], %s358
      %s361 = sshll.u32 [#allocation3], 4
      %s362 = int_to_ptr.vmem [resolvable:$true] %s361
      %364 = dma.vmem_to_hbm [thread:$0]  %s362, 16, %s7, [#allocation4]
    $region33: #{tpu_custom_call.1} parent=1 // pred_fallthru
      _
    // Predicated region
    $region34: #{tpu_custom_call.1} parent=1 // pred_check
      _
    $region35: #{tpu_custom_call.1} parent=1 // pred_check_branch
      %366 = sbr.rel (0) target = $region37
    $region36: #{tpu_custom_call.1} parent=1 // pred_region
      %367 = dma.done [#allocation4], 16
    $region37: #{tpu_custom_call.1} parent=1 // pred_fallthru
      _
    %368 = vsyncpa [#allocation4], 1

</llo_original>
